<compile_context>
chip_gen: v5e
topology: v5e:2x2
jax: 0.10.0
libtpu: 0.0.40
codegen_flags: <defaults>
</compile_context>

<pallas_src>
import functools

import jax
import jax.numpy as jnp
from jax.experimental import pallas as pl
from jax.experimental.pallas import tpu as pltpu


FP = 128  # lane-padded feature width (all layer widths here are <= 128)


# ----------------------------- Pallas kernel --------------------------------

def _rgcn_fused_kernel(a_ref, x_ref,
                       w1_ref, b1_ref, w2_ref, b2_ref,
                       w3_ref, b3_ref, w4_ref, b4_ref,
                       o_ref, *, num_rel):
    """All four RGCN layers in one invocation, everything VMEM-resident.

    a_ref : (N, R*N)     relation-concatenated normalized adjacency, bf16
    x_ref : (N, FP)      input node features (lane padded), bf16
    w*_ref: (R, FP, FP)  per-relation weights (zero padded), bf16
    b*_ref: (1, FP)      relation-summed bias (zero padded), f32
    o_ref : (N, FP)      output of the last layer (no ReLU), f32
    """
    a_cat = a_ref[...]  # bf16, read once, reused by all 4 layers

    def layer(h_bf16, w_ref, b_ref, apply_relu):
        # Per-relation feature transforms, stacked along the contraction axis
        # and kept in registers (no VMEM scratch round-trip, no zero-init).
        hw = jnp.concatenate(
            [jnp.dot(h_bf16, w_ref[r], preferred_element_type=jnp.float32)
             for r in range(num_rel)],
            axis=0).astype(jnp.bfloat16)                       # (R*N, FP)
        # Relation sum folded into ONE MXU contraction over K = R*N.
        out = jnp.dot(a_cat, hw, preferred_element_type=jnp.float32)
        out = out + b_ref[...]                                 # f32 epilogue
        if apply_relu:
            out = jnp.maximum(out, 0.0)
        return out

    h = layer(x_ref[...], w1_ref, b1_ref, True).astype(jnp.bfloat16)
    h = layer(h, w2_ref, b2_ref, True).astype(jnp.bfloat16)
    h = layer(h, w3_ref, b3_ref, True).astype(jnp.bfloat16)
    o_ref[...] = layer(h, w4_ref, b4_ref, False)               # f32, lane-dense


# ------------------------------- glue (JAX) ----------------------------------

def normalize_adj(adj):
    """DGL GraphConv norm='both': A_hat = D_in^{-1/2} A D_out^{-1/2}, deg clamp 1."""
    indeg = jnp.maximum(adj.sum(axis=2), 1.0)   # [R, N_dst]
    outdeg = jnp.maximum(adj.sum(axis=1), 1.0)  # [R, N_src]
    return adj / jnp.sqrt(indeg)[:, :, None] / jnp.sqrt(outdeg)[:, None, :]


def rgcn_forward(adj, x, params):
    """adj: [R,N,N] dense per-relation adjacency (edge j->i <=> adj[r,i,j]=1).
    x: [N, in_feats].  params: list of 4 (W [R,F_in,F_out], b [R,F_out])."""
    R, N, _ = adj.shape
    assert len(params) == 4

    a_norm = normalize_adj(adj)
    # A_cat[i, r*N + j] = A_norm[r, i, j]  ->  (N, R*N); K kept exactly R*N
    # (no zero-padded K columns) and cast to bf16 for the MXU.
    a_cat = jnp.transpose(a_norm, (1, 0, 2)).reshape(N, R * N).astype(jnp.bfloat16)

    x_pad = jnp.zeros((N, FP), jnp.bfloat16).at[:, :x.shape[1]].set(
        x.astype(jnp.bfloat16))

    flat_params = []
    for (w, b) in params:
        f_in, f_out = w.shape[1], w.shape[2]
        w_pad = jnp.zeros((R, FP, FP), jnp.bfloat16).at[:, :f_in, :f_out].set(
            w.astype(jnp.bfloat16))
        # HeteroGraphConv 'sum' over relations => biases sum as well (kept f32).
        b_pad = jnp.zeros((1, FP), jnp.float32).at[0, :f_out].set(b.sum(axis=0))
        flat_params += [w_pad, b_pad]

    # Advisory cost estimate for the fused 4-layer call.
    flops = 4 * (R * 2 * N * FP * FP + 2 * N * (R * N) * FP)
    bytes_accessed = (a_cat.size * 2 + x_pad.size * 2
                      + sum(p.size * p.dtype.itemsize for p in flat_params)
                      + N * FP * 4)
    cost = pl.CostEstimate(flops=flops, transcendentals=0,
                           bytes_accessed=bytes_accessed)

    # TODO(synk): at realistic graph sizes (N >> 128) tile with grid=(i_dst, k_src),
    # K/source axis last + "arbitrary" with a f32 VMEM accumulator (pl.when init /
    # writeback), dst-row axis "parallel" in multiples of 256 (fills v6e/v7x MXUs,
    # shards across v7x's 2 TCs), tiles sized for v7x's 64 MiB VMEM
    # (vmem_limit_bytes with headroom), and block-sparse A tiles via
    # PrefetchScalarGridSpec + pl.when to skip empty blocks.  At N=16 everything
    # fits in one VMEM-resident gridless call, which is faster than any grid.
    kernel = functools.partial(_rgcn_fused_kernel, num_rel=R)
    n_inputs = 2 + len(flat_params)
    out_pad = pl.pallas_call(
        kernel,
        out_shape=jax.ShapeDtypeStruct((N, FP), jnp.float32),
        in_specs=[pl.BlockSpec(memory_space=pltpu.MemorySpace.VMEM)] * n_inputs,
        out_specs=pl.BlockSpec(memory_space=pltpu.MemorySpace.VMEM),
        cost_estimate=cost,
    )(a_cat, x_pad, *flat_params)

    out_feats = params[-1][0].shape[2]
    return out_pad[:, :out_feats]


def rgcn_reference(adj, x, params):
    """Pure-JAX f32 reference of the same math, for a sanity check."""
    a_norm = normalize_adj(adj)
    h = x
    for li, (w, b) in enumerate(params):
        out = jnp.einsum("rij,jf->rif", a_norm, h)
        out = jnp.einsum("rif,rfg->ig", out, w) + b.sum(axis=0)
        if li < len(params) - 1:
            out = jnp.maximum(out, 0.0)
        h = out
    return h


# --------------------------------- main ---------------------------------------

if __name__ == "__main__":
    key = jax.random.PRNGKey(0)

    # Small deterministic synthetic hetero-graph: 1 node type, 3 relations.
    N = 16                 # nodes
    R = 3                  # relations (rel_names)
    in_feats = 8
    hid_feats1 = 32
    hid_feats2 = 16
    hid_feats3 = 16
    out_feats = 8

    k_adj, k_x, k_w = jax.random.split(key, 3)

    # Dense adjacency per relation (edge j -> i  <=>  adj[r, i, j] = 1).
    adj = (jax.random.uniform(k_adj, (R, N, N)) < 0.3).astype(jnp.float32)
    x = jax.random.normal(k_x, (N, in_feats), dtype=jnp.float32)

    # Deterministic parameter init (xavier-ish scale; bias small nonzero).
    dims = [in_feats, hid_feats1, hid_feats2, hid_feats3, out_feats]
    params = []
    wkeys = jax.random.split(k_w, len(dims) - 1)
    for li in range(len(dims) - 1):
        f_in, f_out = dims[li], dims[li + 1]
        scale = (2.0 / (f_in + f_out)) ** 0.5
        w = scale * jax.random.normal(wkeys[li], (R, f_in, f_out), dtype=jnp.float32)
        b = 0.01 * jnp.arange(R * f_out, dtype=jnp.float32).reshape(R, f_out)
        params.append((w, b))

    out = rgcn_forward(adj, x, params)
    out = jax.block_until_ready(out)

    ref = rgcn_reference(adj, x, params)
    assert out.shape == (N, out_feats)
    # bf16 operands (f32 accumulation) => compare with a bf16-appropriate bound.
    max_ref = float(jnp.max(jnp.abs(ref)))
    max_err = float(jnp.max(jnp.abs(out - ref)))
    assert max_err <= 0.03 * max_ref + 1e-3, f"mismatch vs reference: {max_err}"

    print("KERNEL_OK")
</pallas_src>

<mosaic_0001>
module attributes {stable_mosaic.version = 11 : i64} {
  func.func @_rgcn_fused_kernel(%arg0: memref<16x48xbf16, #tpu.memory_space<vmem>>, %arg1: memref<16x128xbf16, #tpu.memory_space<vmem>>, %arg2: memref<3x128x128xbf16, #tpu.memory_space<vmem>>, %arg3: memref<1x128xf32, #tpu.memory_space<vmem>>, %arg4: memref<3x128x128xbf16, #tpu.memory_space<vmem>>, %arg5: memref<1x128xf32, #tpu.memory_space<vmem>>, %arg6: memref<3x128x128xbf16, #tpu.memory_space<vmem>>, %arg7: memref<1x128xf32, #tpu.memory_space<vmem>>, %arg8: memref<3x128x128xbf16, #tpu.memory_space<vmem>>, %arg9: memref<1x128xf32, #tpu.memory_space<vmem>>, %arg10: memref<16x128xf32, #tpu.memory_space<vmem>>) attributes {dimension_semantics = [], scalar_prefetch = 0 : i64, scratch_operands = 0 : i64, tpu.core_type = #tpu.core_type<tc>} {
    %c0 = arith.constant 0 : index
    %c0_0 = arith.constant 0 : index
    %0 = vector.load %arg0[%c0, %c0_0] : memref<16x48xbf16, #tpu.memory_space<vmem>>, vector<16x48xbf16>
    %c0_1 = arith.constant 0 : index
    %c0_2 = arith.constant 0 : index
    %1 = vector.load %arg1[%c0_1, %c0_2] : memref<16x128xbf16, #tpu.memory_space<vmem>>, vector<16x128xbf16>
    %c0_3 = arith.constant 0 : index
    %c0_4 = arith.constant 0 : index
    %c0_5 = arith.constant 0 : index
    %2 = vector.load %arg2[%c0_3, %c0_4, %c0_5] : memref<3x128x128xbf16, #tpu.memory_space<vmem>>, vector<1x128x128xbf16>
    %3 = vector.shape_cast %2 : vector<1x128x128xbf16> to vector<128x128xbf16>
    %cst = arith.constant dense<0.000000e+00> : vector<16x128xf32>
    %4 = tpu.matmul %1, %3, %cst {dimension_numbers = #tpu.dot_dimension_numbers<[1], [0], [0], [1], [0, 0, 1, 1], [], []>} : vector<16x128xbf16>, vector<128x128xbf16>, vector<16x128xf32> -> vector<16x128xf32>
    %c1 = arith.constant 1 : index
    %c0_6 = arith.constant 0 : index
    %c0_7 = arith.constant 0 : index
    %5 = vector.load %arg2[%c1, %c0_6, %c0_7] : memref<3x128x128xbf16, #tpu.memory_space<vmem>>, vector<1x128x128xbf16>
    %6 = vector.shape_cast %5 : vector<1x128x128xbf16> to vector<128x128xbf16>
    %cst_8 = arith.constant dense<0.000000e+00> : vector<16x128xf32>
    %7 = tpu.matmul %1, %6, %cst_8 {dimension_numbers = #tpu.dot_dimension_numbers<[1], [0], [0], [1], [0, 0, 1, 1], [], []>} : vector<16x128xbf16>, vector<128x128xbf16>, vector<16x128xf32> -> vector<16x128xf32>
    %c2 = arith.constant 2 : index
    %c0_9 = arith.constant 0 : index
    %c0_10 = arith.constant 0 : index
    %8 = vector.load %arg2[%c2, %c0_9, %c0_10] : memref<3x128x128xbf16, #tpu.memory_space<vmem>>, vector<1x128x128xbf16>
    %9 = vector.shape_cast %8 : vector<1x128x128xbf16> to vector<128x128xbf16>
    %cst_11 = arith.constant dense<0.000000e+00> : vector<16x128xf32>
    %10 = tpu.matmul %1, %9, %cst_11 {dimension_numbers = #tpu.dot_dimension_numbers<[1], [0], [0], [1], [0, 0, 1, 1], [], []>} : vector<16x128xbf16>, vector<128x128xbf16>, vector<16x128xf32> -> vector<16x128xf32>
    %11 = tpu.concatenate %4, %7, %10 in 0 : vector<16x128xf32>, vector<16x128xf32>, vector<16x128xf32> -> vector<48x128xf32>
    %12 = arith.truncf %11 : vector<48x128xf32> to vector<48x128xbf16>
    %cst_12 = arith.constant dense<0.000000e+00> : vector<16x128xf32>
    %13 = tpu.matmul %0, %12, %cst_12 {dimension_numbers = #tpu.dot_dimension_numbers<[1], [0], [0], [1], [0, 0, 1, 1], [], []>} : vector<16x48xbf16>, vector<48x128xbf16>, vector<16x128xf32> -> vector<16x128xf32>
    %c0_13 = arith.constant 0 : index
    %c0_14 = arith.constant 0 : index
    %14 = vector.load %arg3[%c0_13, %c0_14] : memref<1x128xf32, #tpu.memory_space<vmem>>, vector<1x128xf32>
    %15 = vector.broadcast %14 : vector<1x128xf32> to vector<16x128xf32>
    %16 = arith.addf %13, %15 : vector<16x128xf32>
    %cst_15 = arith.constant 0.000000e+00 : f32
    %17 = vector.broadcast %cst_15 : f32 to vector<16x128xf32>
    %18 = arith.maximumf %16, %17 : vector<16x128xf32>
    %19 = arith.truncf %18 : vector<16x128xf32> to vector<16x128xbf16>
    %c0_16 = arith.constant 0 : index
    %c0_17 = arith.constant 0 : index
    %c0_18 = arith.constant 0 : index
    %20 = vector.load %arg4[%c0_16, %c0_17, %c0_18] : memref<3x128x128xbf16, #tpu.memory_space<vmem>>, vector<1x128x128xbf16>
    %21 = vector.shape_cast %20 : vector<1x128x128xbf16> to vector<128x128xbf16>
    %cst_19 = arith.constant dense<0.000000e+00> : vector<16x128xf32>
    %22 = tpu.matmul %19, %21, %cst_19 {dimension_numbers = #tpu.dot_dimension_numbers<[1], [0], [0], [1], [0, 0, 1, 1], [], []>} : vector<16x128xbf16>, vector<128x128xbf16>, vector<16x128xf32> -> vector<16x128xf32>
    %c1_20 = arith.constant 1 : index
    %c0_21 = arith.constant 0 : index
    %c0_22 = arith.constant 0 : index
    %23 = vector.load %arg4[%c1_20, %c0_21, %c0_22] : memref<3x128x128xbf16, #tpu.memory_space<vmem>>, vector<1x128x128xbf16>
    %24 = vector.shape_cast %23 : vector<1x128x128xbf16> to vector<128x128xbf16>
    %cst_23 = arith.constant dense<0.000000e+00> : vector<16x128xf32>
    %25 = tpu.matmul %19, %24, %cst_23 {dimension_numbers = #tpu.dot_dimension_numbers<[1], [0], [0], [1], [0, 0, 1, 1], [], []>} : vector<16x128xbf16>, vector<128x128xbf16>, vector<16x128xf32> -> vector<16x128xf32>
    %c2_24 = arith.constant 2 : index
    %c0_25 = arith.constant 0 : index
    %c0_26 = arith.constant 0 : index
    %26 = vector.load %arg4[%c2_24, %c0_25, %c0_26] : memref<3x128x128xbf16, #tpu.memory_space<vmem>>, vector<1x128x128xbf16>
    %27 = vector.shape_cast %26 : vector<1x128x128xbf16> to vector<128x128xbf16>
    %cst_27 = arith.constant dense<0.000000e+00> : vector<16x128xf32>
    %28 = tpu.matmul %19, %27, %cst_27 {dimension_numbers = #tpu.dot_dimension_numbers<[1], [0], [0], [1], [0, 0, 1, 1], [], []>} : vector<16x128xbf16>, vector<128x128xbf16>, vector<16x128xf32> -> vector<16x128xf32>
    %29 = tpu.concatenate %22, %25, %28 in 0 : vector<16x128xf32>, vector<16x128xf32>, vector<16x128xf32> -> vector<48x128xf32>
    %30 = arith.truncf %29 : vector<48x128xf32> to vector<48x128xbf16>
    %cst_28 = arith.constant dense<0.000000e+00> : vector<16x128xf32>
    %31 = tpu.matmul %0, %30, %cst_28 {dimension_numbers = #tpu.dot_dimension_numbers<[1], [0], [0], [1], [0, 0, 1, 1], [], []>} : vector<16x48xbf16>, vector<48x128xbf16>, vector<16x128xf32> -> vector<16x128xf32>
    %c0_29 = arith.constant 0 : index
    %c0_30 = arith.constant 0 : index
    %32 = vector.load %arg5[%c0_29, %c0_30] : memref<1x128xf32, #tpu.memory_space<vmem>>, vector<1x128xf32>
    %33 = vector.broadcast %32 : vector<1x128xf32> to vector<16x128xf32>
    %34 = arith.addf %31, %33 : vector<16x128xf32>
    %cst_31 = arith.constant 0.000000e+00 : f32
    %35 = vector.broadcast %cst_31 : f32 to vector<16x128xf32>
    %36 = arith.maximumf %34, %35 : vector<16x128xf32>
    %37 = arith.truncf %36 : vector<16x128xf32> to vector<16x128xbf16>
    %c0_32 = arith.constant 0 : index
    %c0_33 = arith.constant 0 : index
    %c0_34 = arith.constant 0 : index
    %38 = vector.load %arg6[%c0_32, %c0_33, %c0_34] : memref<3x128x128xbf16, #tpu.memory_space<vmem>>, vector<1x128x128xbf16>
    %39 = vector.shape_cast %38 : vector<1x128x128xbf16> to vector<128x128xbf16>
    %cst_35 = arith.constant dense<0.000000e+00> : vector<16x128xf32>
    %40 = tpu.matmul %37, %39, %cst_35 {dimension_numbers = #tpu.dot_dimension_numbers<[1], [0], [0], [1], [0, 0, 1, 1], [], []>} : vector<16x128xbf16>, vector<128x128xbf16>, vector<16x128xf32> -> vector<16x128xf32>
    %c1_36 = arith.constant 1 : index
    %c0_37 = arith.constant 0 : index
    %c0_38 = arith.constant 0 : index
    %41 = vector.load %arg6[%c1_36, %c0_37, %c0_38] : memref<3x128x128xbf16, #tpu.memory_space<vmem>>, vector<1x128x128xbf16>
    %42 = vector.shape_cast %41 : vector<1x128x128xbf16> to vector<128x128xbf16>
    %cst_39 = arith.constant dense<0.000000e+00> : vector<16x128xf32>
    %43 = tpu.matmul %37, %42, %cst_39 {dimension_numbers = #tpu.dot_dimension_numbers<[1], [0], [0], [1], [0, 0, 1, 1], [], []>} : vector<16x128xbf16>, vector<128x128xbf16>, vector<16x128xf32> -> vector<16x128xf32>
    %c2_40 = arith.constant 2 : index
    %c0_41 = arith.constant 0 : index
    %c0_42 = arith.constant 0 : index
    %44 = vector.load %arg6[%c2_40, %c0_41, %c0_42] : memref<3x128x128xbf16, #tpu.memory_space<vmem>>, vector<1x128x128xbf16>
    %45 = vector.shape_cast %44 : vector<1x128x128xbf16> to vector<128x128xbf16>
    %cst_43 = arith.constant dense<0.000000e+00> : vector<16x128xf32>
    %46 = tpu.matmul %37, %45, %cst_43 {dimension_numbers = #tpu.dot_dimension_numbers<[1], [0], [0], [1], [0, 0, 1, 1], [], []>} : vector<16x128xbf16>, vector<128x128xbf16>, vector<16x128xf32> -> vector<16x128xf32>
    %47 = tpu.concatenate %40, %43, %46 in 0 : vector<16x128xf32>, vector<16x128xf32>, vector<16x128xf32> -> vector<48x128xf32>
    %48 = arith.truncf %47 : vector<48x128xf32> to vector<48x128xbf16>
    %cst_44 = arith.constant dense<0.000000e+00> : vector<16x128xf32>
    %49 = tpu.matmul %0, %48, %cst_44 {dimension_numbers = #tpu.dot_dimension_numbers<[1], [0], [0], [1], [0, 0, 1, 1], [], []>} : vector<16x48xbf16>, vector<48x128xbf16>, vector<16x128xf32> -> vector<16x128xf32>
    %c0_45 = arith.constant 0 : index
    %c0_46 = arith.constant 0 : index
    %50 = vector.load %arg7[%c0_45, %c0_46] : memref<1x128xf32, #tpu.memory_space<vmem>>, vector<1x128xf32>
    %51 = vector.broadcast %50 : vector<1x128xf32> to vector<16x128xf32>
    %52 = arith.addf %49, %51 : vector<16x128xf32>
    %cst_47 = arith.constant 0.000000e+00 : f32
    %53 = vector.broadcast %cst_47 : f32 to vector<16x128xf32>
    %54 = arith.maximumf %52, %53 : vector<16x128xf32>
    %55 = arith.truncf %54 : vector<16x128xf32> to vector<16x128xbf16>
    %c0_48 = arith.constant 0 : index
    %c0_49 = arith.constant 0 : index
    %c0_50 = arith.constant 0 : index
    %56 = vector.load %arg8[%c0_48, %c0_49, %c0_50] : memref<3x128x128xbf16, #tpu.memory_space<vmem>>, vector<1x128x128xbf16>
    %57 = vector.shape_cast %56 : vector<1x128x128xbf16> to vector<128x128xbf16>
    %cst_51 = arith.constant dense<0.000000e+00> : vector<16x128xf32>
    %58 = tpu.matmul %55, %57, %cst_51 {dimension_numbers = #tpu.dot_dimension_numbers<[1], [0], [0], [1], [0, 0, 1, 1], [], []>} : vector<16x128xbf16>, vector<128x128xbf16>, vector<16x128xf32> -> vector<16x128xf32>
    %c1_52 = arith.constant 1 : index
    %c0_53 = arith.constant 0 : index
    %c0_54 = arith.constant 0 : index
    %59 = vector.load %arg8[%c1_52, %c0_53, %c0_54] : memref<3x128x128xbf16, #tpu.memory_space<vmem>>, vector<1x128x128xbf16>
    %60 = vector.shape_cast %59 : vector<1x128x128xbf16> to vector<128x128xbf16>
    %cst_55 = arith.constant dense<0.000000e+00> : vector<16x128xf32>
    %61 = tpu.matmul %55, %60, %cst_55 {dimension_numbers = #tpu.dot_dimension_numbers<[1], [0], [0], [1], [0, 0, 1, 1], [], []>} : vector<16x128xbf16>, vector<128x128xbf16>, vector<16x128xf32> -> vector<16x128xf32>
    %c2_56 = arith.constant 2 : index
    %c0_57 = arith.constant 0 : index
    %c0_58 = arith.constant 0 : index
    %62 = vector.load %arg8[%c2_56, %c0_57, %c0_58] : memref<3x128x128xbf16, #tpu.memory_space<vmem>>, vector<1x128x128xbf16>
    %63 = vector.shape_cast %62 : vector<1x128x128xbf16> to vector<128x128xbf16>
    %cst_59 = arith.constant dense<0.000000e+00> : vector<16x128xf32>
    %64 = tpu.matmul %55, %63, %cst_59 {dimension_numbers = #tpu.dot_dimension_numbers<[1], [0], [0], [1], [0, 0, 1, 1], [], []>} : vector<16x128xbf16>, vector<128x128xbf16>, vector<16x128xf32> -> vector<16x128xf32>
    %65 = tpu.concatenate %58, %61, %64 in 0 : vector<16x128xf32>, vector<16x128xf32>, vector<16x128xf32> -> vector<48x128xf32>
    %66 = arith.truncf %65 : vector<48x128xf32> to vector<48x128xbf16>
    %cst_60 = arith.constant dense<0.000000e+00> : vector<16x128xf32>
    %67 = tpu.matmul %0, %66, %cst_60 {dimension_numbers = #tpu.dot_dimension_numbers<[1], [0], [0], [1], [0, 0, 1, 1], [], []>} : vector<16x48xbf16>, vector<48x128xbf16>, vector<16x128xf32> -> vector<16x128xf32>
    %c0_61 = arith.constant 0 : index
    %c0_62 = arith.constant 0 : index
    %68 = vector.load %arg9[%c0_61, %c0_62] : memref<1x128xf32, #tpu.memory_space<vmem>>, vector<1x128xf32>
    %69 = vector.broadcast %68 : vector<1x128xf32> to vector<16x128xf32>
    %70 = arith.addf %67, %69 : vector<16x128xf32>
    %c0_63 = arith.constant 0 : index
    %c0_64 = arith.constant 0 : index
    %71 = vector.load %arg10[%c0_63, %c0_64] : memref<16x128xf32, #tpu.memory_space<vmem>>, vector<16x128xf32>
    tpu.vector_store %arg10[%c0_63, %c0_64], %70 {strides = array<i32>} : memref<16x128xf32, #tpu.memory_space<vmem>>, vector<16x128xf32>,
    return
  }
}

</mosaic_0001>

<llo_original>
// kernel: tpu_custom_call.1
$region0: #{tpu_custom_call.1}
  #allocation0 [shape = 'u32[]', space=smem, size = 0x4, offset = 0x4, fixed_abs, tag = 'smem constant byte address 0x4 - core index']
  #allocation1 [shape = 'u32[72,128]{1,0:T(1,128)}', space=vmem, size = 0x9000, scoped, tag = 'internal scratch']
  %s0 = inlined_call_operand.hbm [shape: bf16[16,48], index: 0, kind: input, shape index: {}]
  %s1 = inlined_call_operand.hbm [shape: bf16[16,128], index: 1, kind: input, shape index: {}]
  %s2 = inlined_call_operand.hbm [shape: bf16[3,128,128], index: 2, kind: input, shape index: {}]
  %s3 = inlined_call_operand.vmem [shape: f32[1,128], index: 3, kind: input, shape index: {}]
  %s4 = inlined_call_operand.hbm [shape: bf16[3,128,128], index: 4, kind: input, shape index: {}]
  %s5 = inlined_call_operand.vmem [shape: f32[1,128], index: 5, kind: input, shape index: {}]
  %s6 = inlined_call_operand.hbm [shape: bf16[3,128,128], index: 6, kind: input, shape index: {}]
  %s7 = inlined_call_operand.vmem [shape: f32[1,128], index: 7, kind: input, shape index: {}]
  %s8 = inlined_call_operand.hbm [shape: bf16[3,128,128], index: 8, kind: input, shape index: {}]
  %s9 = inlined_call_operand.vmem [shape: f32[1,128], index: 9, kind: input, shape index: {}]
  %s10 = inlined_call_operand.hbm [shape: f32[16,128], index: 10, kind: output, shape index: {}]
  %s11 = sld [smem:[#allocation0]]
  $region74: #{tpu_custom_call.1} parent=0
    _
  %s13 = ssub.s32 1, %s11
  %s14 = scalar_select 0, %s13, %s11
  $region1: #{tpu_custom_call.1} parent=0
    #allocation2 [shape = 'u8[4096]{0}', space=vmem, size = 0x1000, scoped, tag = 'input window, operand 0, single buffered']
    #allocation3 [shape = 's32[1]{0}', space=sflag, size = 0x4, scoped, tag = 'scoped memory for tpu_custom_call.1']
    #allocation4 [shape = 's32[1]{0}', space=sflag, size = 0x4, scoped, tag = 'scoped memory for tpu_custom_call.1']
    #allocation5 [shape = 'u8[4096]{0}', space=vmem, size = 0x1000, scoped, tag = 'input window, operand 1, single buffered']
    #allocation6 [shape = 's32[1]{0}', space=sflag, size = 0x4, scoped, tag = 'scoped memory for tpu_custom_call.1']
    #allocation7 [shape = 'u8[98304]{0}', space=vmem, size = 0x18000, scoped, tag = 'input window, operand 2, single buffered']
    #allocation8 [shape = 'u8[98304]{0}', space=vmem, size = 0x18000, scoped, tag = 'input window, operand 4, single buffered']
    #allocation9 [shape = 's32[1]{0}', space=sflag, size = 0x4, scoped, tag = 'scoped memory for tpu_custom_call.1']
    #allocation10 [shape = 'u8[98304]{0}', space=vmem, size = 0x18000, scoped, tag = 'input window, operand 6, single buffered']
    #allocation11 [shape = 'u8[98304]{0}', space=vmem, size = 0x18000, scoped, tag = 'input window, operand 8, single buffered']
    #allocation12 [shape = 's32[1]{0}', space=sflag, size = 0x4, scoped, tag = 'scoped memory for tpu_custom_call.1']
    #allocation13 [shape = 'u8[8192]{0}', space=vmem, size = 0x2000, scoped, tag = 'output window, operand 0, single buffered']
    %15 = vsyncpa [#allocation3], 0
    %16 = vsyncpa [#allocation6], 0
    %17 = vsyncpa [#allocation9], 0
    %18 = vsyncpa [#allocation12], 0
    %19 = vsyncpa [#allocation4], 0
    // Predicated region
    $region2: #{tpu_custom_call.1} parent=1 // pred_check
      _
    $region3: #{tpu_custom_call.1} parent=1 // pred_check_branch
      %21 = sbr.rel (0) target = $region5
    $region4: #{tpu_custom_call.1} parent=1 // pred_region
      %23 = vsyncadd [#allocation3], 0
      %s24 = sshll.u32 %s0, 4
      %s25 = int_to_ptr.hbm [resolvable:$true] %s24
      %s26 = sshll.u32 [#allocation2], 4
      %s27 = int_to_ptr.vmem [resolvable:$true] %s26
      %32 = dma.hbm_to_vmem [thread:$0]  %s25, 128, %s27, [#allocation3], 64, 64, 4
    $region5: #{tpu_custom_call.1} parent=1 // pred_fallthru
      _
    // Predicated region
    $region6: #{tpu_custom_call.1} parent=1 // pred_check
      _
    $region7: #{tpu_custom_call.1} parent=1 // pred_check_branch
      %34 = sbr.rel (0) target = $region9
    $region8: #{tpu_custom_call.1} parent=1 // pred_region
      %36 = vsyncadd [#allocation6], 0
      %s37 = sshll.u32 %s1, 4
      %s38 = int_to_ptr.hbm [resolvable:$true] %s37
      %s39 = sshll.u32 [#allocation5], 4
      %s40 = int_to_ptr.vmem [resolvable:$true] %s39
      %45 = dma.hbm_to_vmem [thread:$0]  %s38, 128, %s40, [#allocation6], 64, 64, 4
    $region9: #{tpu_custom_call.1} parent=1 // pred_fallthru
      _
    // Predicated region
    $region10: #{tpu_custom_call.1} parent=1 // pred_check
      _
    $region11: #{tpu_custom_call.1} parent=1 // pred_check_branch
      %47 = sbr.rel (0) target = $region13
    $region12: #{tpu_custom_call.1} parent=1 // pred_region
      %49 = vsyncadd [#allocation6], 0
      %s50 = sshll.u32 %s2, 4
      %s51 = int_to_ptr.hbm [resolvable:$true] %s50
      %s52 = sshll.u32 [#allocation7], 4
      %s53 = int_to_ptr.vmem [resolvable:$true] %s52
      %58 = dma.hbm_to_vmem [thread:$0]  %s51, 3072, %s53, [#allocation6], 64, 64, 4
    $region13: #{tpu_custom_call.1} parent=1 // pred_fallthru
      _
    // Predicated region
    $region14: #{tpu_custom_call.1} parent=1 // pred_check
      _
    $region15: #{tpu_custom_call.1} parent=1 // pred_check_branch
      %60 = sbr.rel (0) target = $region17
    $region16: #{tpu_custom_call.1} parent=1 // pred_region
      _
    $region17: #{tpu_custom_call.1} parent=1 // pred_fallthru
      _
    // Predicated region
    $region18: #{tpu_custom_call.1} parent=1 // pred_check
      _
    $region19: #{tpu_custom_call.1} parent=1 // pred_check_branch
      %62 = sbr.rel (0) target = $region21
    $region20: #{tpu_custom_call.1} parent=1 // pred_region
      %64 = vsyncadd [#allocation9], 0
      %s65 = sshll.u32 %s4, 4
      %s66 = int_to_ptr.hbm [resolvable:$true] %s65
      %s67 = sshll.u32 [#allocation8], 4
      %s68 = int_to_ptr.vmem [resolvable:$true] %s67
      %73 = dma.hbm_to_vmem [thread:$0]  %s66, 3072, %s68, [#allocation9], 64, 64, 4
    $region21: #{tpu_custom_call.1} parent=1 // pred_fallthru
      _
    // Predicated region
    $region22: #{tpu_custom_call.1} parent=1 // pred_check
      _
    $region23: #{tpu_custom_call.1} parent=1 // pred_check_branch
      %75 = sbr.rel (0) target = $region25
    $region24: #{tpu_custom_call.1} parent=1 // pred_region
      _
    $region25: #{tpu_custom_call.1} parent=1 // pred_fallthru
      _
    // Predicated region
    $region26: #{tpu_custom_call.1} parent=1 // pred_check
      _
    $region27: #{tpu_custom_call.1} parent=1 // pred_check_branch
      %77 = sbr.rel (0) target = $region29
    $region28: #{tpu_custom_call.1} parent=1 // pred_region
      %79 = vsyncadd [#allocation9], 0
      %s80 = sshll.u32 %s6, 4
      %s81 = int_to_ptr.hbm [resolvable:$true] %s80
      %s82 = sshll.u32 [#allocation10], 4
      %s83 = int_to_ptr.vmem [resolvable:$true] %s82
      %88 = dma.hbm_to_vmem [thread:$0]  %s81, 3072, %s83, [#allocation9], 64, 64, 4
    $region29: #{tpu_custom_call.1} parent=1 // pred_fallthru
      _
    // Predicated region
    $region30: #{tpu_custom_call.1} parent=1 // pred_check
      _
    $region31: #{tpu_custom_call.1} parent=1 // pred_check_branch
      %90 = sbr.rel (0) target = $region33
    $region32: #{tpu_custom_call.1} parent=1 // pred_region
      _
    $region33: #{tpu_custom_call.1} parent=1 // pred_fallthru
      _
    // Predicated region
    $region34: #{tpu_custom_call.1} parent=1 // pred_check
      _
    $region35: #{tpu_custom_call.1} parent=1 // pred_check_branch
      %92 = sbr.rel (0) target = $region37
    $region36: #{tpu_custom_call.1} parent=1 // pred_region
      %94 = vsyncadd [#allocation12], 0
      %s95 = sshll.u32 %s8, 4
      %s96 = int_to_ptr.hbm [resolvable:$true] %s95
      %s97 = sshll.u32 [#allocation11], 4
      %s98 = int_to_ptr.vmem [resolvable:$true] %s97
      %103 = dma.hbm_to_vmem [thread:$0]  %s96, 3072, %s98, [#allocation12], 64, 64, 4
    $region37: #{tpu_custom_call.1} parent=1 // pred_fallthru
      _
    // Predicated region
    $region38: #{tpu_custom_call.1} parent=1 // pred_check
      _
    $region39: #{tpu_custom_call.1} parent=1 // pred_check_branch
      %105 = sbr.rel (0) target = $region41
    $region40: #{tpu_custom_call.1} parent=1 // pred_region
      _
    $region41: #{tpu_custom_call.1} parent=1 // pred_fallthru
      _
    // Predicated region
    $region42: #{tpu_custom_call.1} parent=1 // pred_check
      _
    $region43: #{tpu_custom_call.1} parent=1 // pred_check_branch
      %107 = sbr.rel (0) target = $region45
    $region44: #{tpu_custom_call.1} parent=1 // pred_region
      %109 = dma.done [#allocation3], 128
    $region45: #{tpu_custom_call.1} parent=1 // pred_fallthru
      _
    // Predicated region
    $region46: #{tpu_custom_call.1} parent=1 // pred_check
      _
    $region47: #{tpu_custom_call.1} parent=1 // pred_check_branch
      %111 = sbr.rel (0) target = $region49
    $region48: #{tpu_custom_call.1} parent=1 // pred_region
      %113 = dma.done [#allocation6], 128
    $region49: #{tpu_custom_call.1} parent=1 // pred_fallthru
      _
    // Predicated region
    $region50: #{tpu_custom_call.1} parent=1 // pred_check
      _
    $region51: #{tpu_custom_call.1} parent=1 // pred_check_branch
      %115 = sbr.rel (0) target = $region53
    $region52: #{tpu_custom_call.1} parent=1 // pred_region
      %117 = dma.done [#allocation6], 3072
    $region53: #{tpu_custom_call.1} parent=1 // pred_fallthru
      _
    // Predicated region
    $region54: #{tpu_custom_call.1} parent=1 // pred_check
      _
    $region55: #{tpu_custom_call.1} parent=1 // pred_check_branch
      %119 = sbr.rel (0) target = $region57
    $region56: #{tpu_custom_call.1} parent=1 // pred_region
      %121 = dma.done [#allocation9], 3072
    $region57: #{tpu_custom_call.1} parent=1 // pred_fallthru
      _
    // Predicated region
    $region58: #{tpu_custom_call.1} parent=1 // pred_check
      _
    $region59: #{tpu_custom_call.1} parent=1 // pred_check_branch
      %123 = sbr.rel (0) target = $region61
    $region60: #{tpu_custom_call.1} parent=1 // pred_region
      %125 = dma.done [#allocation9], 3072
    $region61: #{tpu_custom_call.1} parent=1 // pred_fallthru
      _
    // Predicated region
    $region62: #{tpu_custom_call.1} parent=1 // pred_check
      _
    $region63: #{tpu_custom_call.1} parent=1 // pred_check_branch
      %127 = sbr.rel (0) target = $region65
    $region64: #{tpu_custom_call.1} parent=1 // pred_region
      %129 = dma.done [#allocation12], 3072
    $region65: #{tpu_custom_call.1} parent=1 // pred_fallthru
      _
    %v131 = vld [vmem:[#allocation2] sm:$0xf]
    %v132 = vld [vmem:[#allocation2 + $0x4] sm:$0xf]
    %v133 = vld [vmem:[#allocation5] sm:$0xf]
    %v134 = vld [vmem:[#allocation5 + $0x4] sm:$0xf]
    %v135 = vld [vmem:[#allocation7] sm:$0xf]
    %v136 = vld [vmem:[#allocation7 + $0x4] sm:$0xf]
    %v137 = vld [vmem:[#allocation7 + $0x8] sm:$0xf]
    %v138 = vld [vmem:[#allocation7 + $0xc] sm:$0xf]
    %v139 = vld [vmem:[#allocation7 + $0x10] sm:$0xf]
    %v140 = vld [vmem:[#allocation7 + $0x14] sm:$0xf]
    %v141 = vld [vmem:[#allocation7 + $0x18] sm:$0xf]
    %v142 = vld [vmem:[#allocation7 + $0x1c] sm:$0xf]
    %v143 = vld [vmem:[#allocation7 + $0x20] sm:$0xf]
    %v144 = vld [vmem:[#allocation7 + $0x24] sm:$0xf]
    %v145 = vld [vmem:[#allocation7 + $0x28] sm:$0xf]
    %v146 = vld [vmem:[#allocation7 + $0x2c] sm:$0xf]
    %v147 = vld [vmem:[#allocation7 + $0x30] sm:$0xf]
    %v148 = vld [vmem:[#allocation7 + $0x34] sm:$0xf]
    %v149 = vld [vmem:[#allocation7 + $0x38] sm:$0xf]
    %v150 = vld [vmem:[#allocation7 + $0x3c] sm:$0xf]
    %v153 = vunpack.c.l.b16 %v133
    %v154 = vunpack.c.l.b16 %v134
    %v155 = vpack.c.b16 %v154, %v153
    %v173 = vunpack.c.l.b16 %v135
    %v174 = vunpack.c.l.b16 %v136
    %v175 = vunpack.c.l.b16 %v137
    %v176 = vunpack.c.l.b16 %v138
    %v177 = vunpack.c.l.b16 %v139
    %v178 = vunpack.c.l.b16 %v140
    %v179 = vunpack.c.l.b16 %v141
    %v180 = vunpack.c.l.b16 %v142
    %v181 = vunpack.c.l.b16 %v143
    %v182 = vunpack.c.l.b16 %v144
    %v183 = vunpack.c.l.b16 %v145
    %v184 = vunpack.c.l.b16 %v146
    %v185 = vunpack.c.l.b16 %v147
    %v186 = vunpack.c.l.b16 %v148
    %v187 = vunpack.c.l.b16 %v149
    %v188 = vunpack.c.l.b16 %v150
    %v189 = vpack.c.b16 %v174, %v173
    %v190 = vpack.c.b16 %v176, %v175
    %v191 = vpack.c.b16 %v178, %v177
    %v192 = vpack.c.b16 %v180, %v179
    %v193 = vpack.c.b16 %v182, %v181
    %v194 = vpack.c.b16 %v184, %v183
    %v195 = vpack.c.b16 %v186, %v185
    %v196 = vpack.c.b16 %v188, %v187
    %205 = vmatpush.bf16.msra.mxu0 %v196
    %206 = vmatpush.bf16.msra.mxu0 %v195
    %207 = vmatpush.bf16.msra.mxu0 %v194
    %208 = vmatpush.bf16.msra.mxu0 %v193
    %209 = vmatpush.bf16.msra.mxu0 %v192
    %210 = vmatpush.bf16.msra.mxu0 %v191
    %211 = vmatpush.bf16.msra.mxu0 %v190
    %212 = vmatpush.bf16.msra.mxu0 %v189
    %213 = vmatmul.bf16.gmra.mxu0 %v155
    %v214 = vpop.f32.mrf.mxu0
    %v215 = vadd.f32 0.0, %v214
    %v216 = vpop.f32.mrf.mxu0
    %v217 = vadd.f32 0.0, %v216
    %218 = vdwg.mxu0
    %s219 = scalar_lea.vmem [#allocation7], 64
    %v220 = vld [vmem:[%s219] sm:$0xf]
    %v221 = vld [vmem:[%s219 + $0x4] sm:$0xf]
    %v222 = vld [vmem:[%s219 + $0x8] sm:$0xf]
    %v223 = vld [vmem:[%s219 + $0xc] sm:$0xf]
    %v224 = vld [vmem:[%s219 + $0x10] sm:$0xf]
    %v225 = vld [vmem:[%s219 + $0x14] sm:$0xf]
    %v226 = vld [vmem:[%s219 + $0x18] sm:$0xf]
    %v227 = vld [vmem:[%s219 + $0x1c] sm:$0xf]
    %v228 = vld [vmem:[%s219 + $0x20] sm:$0xf]
    %v229 = vld [vmem:[%s219 + $0x24] sm:$0xf]
    %v230 = vld [vmem:[%s219 + $0x28] sm:$0xf]
    %v231 = vld [vmem:[%s219 + $0x2c] sm:$0xf]
    %v232 = vld [vmem:[%s219 + $0x30] sm:$0xf]
    %v233 = vld [vmem:[%s219 + $0x34] sm:$0xf]
    %v234 = vld [vmem:[%s219 + $0x38] sm:$0xf]
    %v235 = vld [vmem:[%s219 + $0x3c] sm:$0xf]
    %v252 = vunpack.c.l.b16 %v220
    %v253 = vunpack.c.l.b16 %v221
    %v254 = vunpack.c.l.b16 %v222
    %v255 = vunpack.c.l.b16 %v223
    %v256 = vunpack.c.l.b16 %v224
    %v257 = vunpack.c.l.b16 %v225
    %v258 = vunpack.c.l.b16 %v226
    %v259 = vunpack.c.l.b16 %v227
    %v260 = vunpack.c.l.b16 %v228
    %v261 = vunpack.c.l.b16 %v229
    %v262 = vunpack.c.l.b16 %v230
    %v263 = vunpack.c.l.b16 %v231
    %v264 = vunpack.c.l.b16 %v232
    %v265 = vunpack.c.l.b16 %v233
    %v266 = vunpack.c.l.b16 %v234
    %v267 = vunpack.c.l.b16 %v235
    %v268 = vpack.c.b16 %v253, %v252
    %v269 = vpack.c.b16 %v255, %v254
    %v270 = vpack.c.b16 %v257, %v256
    %v271 = vpack.c.b16 %v259, %v258
    %v272 = vpack.c.b16 %v261, %v260
    %v273 = vpack.c.b16 %v263, %v262
    %v274 = vpack.c.b16 %v265, %v264
    %v275 = vpack.c.b16 %v267, %v266
    %284 = vmatpush.bf16.msra.mxu0 %v275
    %285 = vmatpush.bf16.msra.mxu0 %v274
    %286 = vmatpush.bf16.msra.mxu0 %v273
    %287 = vmatpush.bf16.msra.mxu0 %v272
    %288 = vmatpush.bf16.msra.mxu0 %v271
    %289 = vmatpush.bf16.msra.mxu0 %v270
    %290 = vmatpush.bf16.msra.mxu0 %v269
    %291 = vmatpush.bf16.msra.mxu0 %v268
    %292 = vmatmul.bf16.gmra.mxu0 %v155
    %v293 = vpop.f32.mrf.mxu0
    %v294 = vadd.f32 0.0, %v293
    %v295 = vpop.f32.mrf.mxu0
    %v296 = vadd.f32 0.0, %v295
    %297 = vdwg.mxu0
    %s298 = scalar_lea.vmem [#allocation7], 128
    %v299 = vld [vmem:[%s298] sm:$0xf]
    %v300 = vld [vmem:[%s298 + $0x4] sm:$0xf]
    %v301 = vld [vmem:[%s298 + $0x8] sm:$0xf]
    %v302 = vld [vmem:[%s298 + $0xc] sm:$0xf]
    %v303 = vld [vmem:[%s298 + $0x10] sm:$0xf]
    %v304 = vld [vmem:[%s298 + $0x14] sm:$0xf]
    %v305 = vld [vmem:[%s298 + $0x18] sm:$0xf]
    %v306 = vld [vmem:[%s298 + $0x1c] sm:$0xf]
    %v307 = vld [vmem:[%s298 + $0x20] sm:$0xf]
    %v308 = vld [vmem:[%s298 + $0x24] sm:$0xf]
    %v309 = vld [vmem:[%s298 + $0x28] sm:$0xf]
    %v310 = vld [vmem:[%s298 + $0x2c] sm:$0xf]
    %v311 = vld [vmem:[%s298 + $0x30] sm:$0xf]
    %v312 = vld [vmem:[%s298 + $0x34] sm:$0xf]
    %v313 = vld [vmem:[%s298 + $0x38] sm:$0xf]
    %v314 = vld [vmem:[%s298 + $0x3c] sm:$0xf]
    %v331 = vunpack.c.l.b16 %v299
    %v332 = vunpack.c.l.b16 %v300
    %v333 = vunpack.c.l.b16 %v301
    %v334 = vunpack.c.l.b16 %v302
    %v335 = vunpack.c.l.b16 %v303
    %v336 = vunpack.c.l.b16 %v304
    %v337 = vunpack.c.l.b16 %v305
    %v338 = vunpack.c.l.b16 %v306
    %v339 = vunpack.c.l.b16 %v307
    %v340 = vunpack.c.l.b16 %v308
    %v341 = vunpack.c.l.b16 %v309
    %v342 = vunpack.c.l.b16 %v310
    %v343 = vunpack.c.l.b16 %v311
    %v344 = vunpack.c.l.b16 %v312
    %v345 = vunpack.c.l.b16 %v313
    %v346 = vunpack.c.l.b16 %v314
    %v347 = vpack.c.b16 %v332, %v331
    %v348 = vpack.c.b16 %v334, %v333
    %v349 = vpack.c.b16 %v336, %v335
    %v350 = vpack.c.b16 %v338, %v337
    %v351 = vpack.c.b16 %v340, %v339
    %v352 = vpack.c.b16 %v342, %v341
    %v353 = vpack.c.b16 %v344, %v343
    %v354 = vpack.c.b16 %v346, %v345
    %363 = vmatpush.bf16.msra.mxu0 %v354
    %364 = vmatpush.bf16.msra.mxu0 %v353
    %365 = vmatpush.bf16.msra.mxu0 %v352
    %366 = vmatpush.bf16.msra.mxu0 %v351
    %367 = vmatpush.bf16.msra.mxu0 %v350
    %368 = vmatpush.bf16.msra.mxu0 %v349
    %369 = vmatpush.bf16.msra.mxu0 %v348
    %370 = vmatpush.bf16.msra.mxu0 %v347
    %371 = vmatmul.bf16.gmra.mxu0 %v155
    %v372 = vpop.f32.mrf.mxu0
    %v373 = vadd.f32 0.0, %v372
    %v374 = vpop.f32.mrf.mxu0
    %v375 = vadd.f32 0.0, %v374
    %376 = vdwg.mxu0
    %v377 = vpack.c.bf16 %v217, %v215
    %v378 = vpack.c.bf16 %v296, %v294
    %v379 = vpack.c.bf16 %v375, %v373
    %v380 = vld [vmem:[%s3] sm:$0x1]
    %v382 = vperm.slane %v380, 0
    %v386 = vunpack.c.l.b16 %v131
    %v387 = vunpack.c.l.b16 %v132
    %v388 = vpack.c.b16 %v387, %v386
    %vm389 = vcmask 392192
    %v391 = vsel %vm389, %v388, 0
    %393 = vmatpush.bf16.msra.mxu0 0
    %394 = vmatpush.bf16.msra.mxu0 0
    %395 = vmatpush.bf16.msra.mxu0 0
    %396 = vmatpush.bf16.msra.mxu0 0
    %397 = vmatpush.bf16.msra.mxu0 0
    %398 = vmatpush.bf16.msra.mxu0 %v379
    %399 = vmatpush.bf16.msra.mxu0 %v378
    %400 = vmatpush.bf16.msra.mxu0 %v377
    %401 = vmatmul.bf16.gmra.mxu0 %v391
    %v402 = vpop.f32.mrf.mxu0
    %v403 = vadd.f32 %v382, %v402
    %v404 = vpop.f32.mrf.mxu0
    %v405 = vadd.f32 %v382, %v404
    %406 = vdwg.mxu0
    %v407 = vmax.f32 %v403, 0.0
    %v408 = vmax.f32 %v405, 0.0
    %v409 = vpack.c.bf16 %v408, %v407
    %v410 = vld [vmem:[#allocation8] sm:$0xf]
    %v411 = vld [vmem:[#allocation8 + $0x4] sm:$0xf]
    %v412 = vld [vmem:[#allocation8 + $0x8] sm:$0xf]
    %v413 = vld [vmem:[#allocation8 + $0xc] sm:$0xf]
    %v414 = vld [vmem:[#allocation8 + $0x10] sm:$0xf]
    %v415 = vld [vmem:[#allocation8 + $0x14] sm:$0xf]
    %v416 = vld [vmem:[#allocation8 + $0x18] sm:$0xf]
    %v417 = vld [vmem:[#allocation8 + $0x1c] sm:$0xf]
    %v418 = vld [vmem:[#allocation8 + $0x20] sm:$0xf]
    %v419 = vld [vmem:[#allocation8 + $0x24] sm:$0xf]
    %v420 = vld [vmem:[#allocation8 + $0x28] sm:$0xf]
    %v421 = vld [vmem:[#allocation8 + $0x2c] sm:$0xf]
    %v422 = vld [vmem:[#allocation8 + $0x30] sm:$0xf]
    %v423 = vld [vmem:[#allocation8 + $0x34] sm:$0xf]
    %v424 = vld [vmem:[#allocation8 + $0x38] sm:$0xf]
    %v425 = vld [vmem:[#allocation8 + $0x3c] sm:$0xf]
    %v442 = vunpack.c.l.b16 %v410
    %v443 = vunpack.c.l.b16 %v411
    %v444 = vunpack.c.l.b16 %v412
    %v445 = vunpack.c.l.b16 %v413
    %v446 = vunpack.c.l.b16 %v414
    %v447 = vunpack.c.l.b16 %v415
    %v448 = vunpack.c.l.b16 %v416
    %v449 = vunpack.c.l.b16 %v417
    %v450 = vunpack.c.l.b16 %v418
    %v451 = vunpack.c.l.b16 %v419
    %v452 = vunpack.c.l.b16 %v420
    %v453 = vunpack.c.l.b16 %v421
    %v454 = vunpack.c.l.b16 %v422
    %v455 = vunpack.c.l.b16 %v423
    %v456 = vunpack.c.l.b16 %v424
    %v457 = vunpack.c.l.b16 %v425
    %v458 = vpack.c.b16 %v443, %v442
    %v459 = vpack.c.b16 %v445, %v444
    %v460 = vpack.c.b16 %v447, %v446
    %v461 = vpack.c.b16 %v449, %v448
    %v462 = vpack.c.b16 %v451, %v450
    %v463 = vpack.c.b16 %v453, %v452
    %v464 = vpack.c.b16 %v455, %v454
    %v465 = vpack.c.b16 %v457, %v456
    %474 = vmatpush.bf16.msra.mxu0 %v465
    %475 = vmatpush.bf16.msra.mxu0 %v464
    %476 = vmatpush.bf16.msra.mxu0 %v463
    %477 = vmatpush.bf16.msra.mxu0 %v462
    %478 = vmatpush.bf16.msra.mxu0 %v461
    %479 = vmatpush.bf16.msra.mxu0 %v460
    %480 = vmatpush.bf16.msra.mxu0 %v459
    %481 = vmatpush.bf16.msra.mxu0 %v458
    %482 = vmatmul.bf16.gmra.mxu0 %v409
    %v483 = vpop.f32.mrf.mxu0
    %v484 = vadd.f32 0.0, %v483
    %v485 = vpop.f32.mrf.mxu0
    %v486 = vadd.f32 0.0, %v485
    %487 = vdwg.mxu0
    %s488 = scalar_lea.vmem [#allocation8], 64
    %v489 = vld [vmem:[%s488] sm:$0xf]
    %v490 = vld [vmem:[%s488 + $0x4] sm:$0xf]
    %v491 = vld [vmem:[%s488 + $0x8] sm:$0xf]
    %v492 = vld [vmem:[%s488 + $0xc] sm:$0xf]
    %v493 = vld [vmem:[%s488 + $0x10] sm:$0xf]
    %v494 = vld [vmem:[%s488 + $0x14] sm:$0xf]
    %v495 = vld [vmem:[%s488 + $0x18] sm:$0xf]
    %v496 = vld [vmem:[%s488 + $0x1c] sm:$0xf]
    %v497 = vld [vmem:[%s488 + $0x20] sm:$0xf]
    %v498 = vld [vmem:[%s488 + $0x24] sm:$0xf]
    %v499 = vld [vmem:[%s488 + $0x28] sm:$0xf]
    %v500 = vld [vmem:[%s488 + $0x2c] sm:$0xf]
    %v501 = vld [vmem:[%s488 + $0x30] sm:$0xf]
    %v502 = vld [vmem:[%s488 + $0x34] sm:$0xf]
    %v503 = vld [vmem:[%s488 + $0x38] sm:$0xf]
    %v504 = vld [vmem:[%s488 + $0x3c] sm:$0xf]
    %v521 = vunpack.c.l.b16 %v489
    %v522 = vunpack.c.l.b16 %v490
    %v523 = vunpack.c.l.b16 %v491
    %v524 = vunpack.c.l.b16 %v492
    %v525 = vunpack.c.l.b16 %v493
    %v526 = vunpack.c.l.b16 %v494
    %v527 = vunpack.c.l.b16 %v495
    %v528 = vunpack.c.l.b16 %v496
    %v529 = vunpack.c.l.b16 %v497
    %v530 = vunpack.c.l.b16 %v498
    %v531 = vunpack.c.l.b16 %v499
    %v532 = vunpack.c.l.b16 %v500
    %v533 = vunpack.c.l.b16 %v501
    %v534 = vunpack.c.l.b16 %v502
    %v535 = vunpack.c.l.b16 %v503
    %v536 = vunpack.c.l.b16 %v504
    %v537 = vpack.c.b16 %v522, %v521
    %v538 = vpack.c.b16 %v524, %v523
    %v539 = vpack.c.b16 %v526, %v525
    %v540 = vpack.c.b16 %v528, %v527
    %v541 = vpack.c.b16 %v530, %v529
    %v542 = vpack.c.b16 %v532, %v531
    %v543 = vpack.c.b16 %v534, %v533
    %v544 = vpack.c.b16 %v536, %v535
    %553 = vmatpush.bf16.msra.mxu0 %v544
    %554 = vmatpush.bf16.msra.mxu0 %v543
    %555 = vmatpush.bf16.msra.mxu0 %v542
    %556 = vmatpush.bf16.msra.mxu0 %v541
    %557 = vmatpush.bf16.msra.mxu0 %v540
    %558 = vmatpush.bf16.msra.mxu0 %v539
    %559 = vmatpush.bf16.msra.mxu0 %v538
    %560 = vmatpush.bf16.msra.mxu0 %v537
    %561 = vmatmul.bf16.gmra.mxu0 %v409
    %v562 = vpop.f32.mrf.mxu0
    %v563 = vadd.f32 0.0, %v562
    %v564 = vpop.f32.mrf.mxu0
    %v565 = vadd.f32 0.0, %v564
    %566 = vdwg.mxu0
    %s567 = scalar_lea.vmem [#allocation8], 128
    %v568 = vld [vmem:[%s567] sm:$0xf]
    %v569 = vld [vmem:[%s567 + $0x4] sm:$0xf]
    %v570 = vld [vmem:[%s567 + $0x8] sm:$0xf]
    %v571 = vld [vmem:[%s567 + $0xc] sm:$0xf]
    %v572 = vld [vmem:[%s567 + $0x10] sm:$0xf]
    %v573 = vld [vmem:[%s567 + $0x14] sm:$0xf]
    %v574 = vld [vmem:[%s567 + $0x18] sm:$0xf]
    %v575 = vld [vmem:[%s567 + $0x1c] sm:$0xf]
    %v576 = vld [vmem:[%s567 + $0x20] sm:$0xf]
    %v577 = vld [vmem:[%s567 + $0x24] sm:$0xf]
    %v578 = vld [vmem:[%s567 + $0x28] sm:$0xf]
    %v579 = vld [vmem:[%s567 + $0x2c] sm:$0xf]
    %v580 = vld [vmem:[%s567 + $0x30] sm:$0xf]
    %v581 = vld [vmem:[%s567 + $0x34] sm:$0xf]
    %v582 = vld [vmem:[%s567 + $0x38] sm:$0xf]
    %v583 = vld [vmem:[%s567 + $0x3c] sm:$0xf]
    %v600 = vunpack.c.l.b16 %v568
    %v601 = vunpack.c.l.b16 %v569
    %v602 = vunpack.c.l.b16 %v570
    %v603 = vunpack.c.l.b16 %v571
    %v604 = vunpack.c.l.b16 %v572
    %v605 = vunpack.c.l.b16 %v573
    %v606 = vunpack.c.l.b16 %v574
    %v607 = vunpack.c.l.b16 %v575
    %v608 = vunpack.c.l.b16 %v576
    %v609 = vunpack.c.l.b16 %v577
    %v610 = vunpack.c.l.b16 %v578
    %v611 = vunpack.c.l.b16 %v579
    %v612 = vunpack.c.l.b16 %v580
    %v613 = vunpack.c.l.b16 %v581
    %v614 = vunpack.c.l.b16 %v582
    %v615 = vunpack.c.l.b16 %v583
    %v616 = vpack.c.b16 %v601, %v600
    %v617 = vpack.c.b16 %v603, %v602
    %v618 = vpack.c.b16 %v605, %v604
    %v619 = vpack.c.b16 %v607, %v606
    %v620 = vpack.c.b16 %v609, %v608
    %v621 = vpack.c.b16 %v611, %v610
    %v622 = vpack.c.b16 %v613, %v612
    %v623 = vpack.c.b16 %v615, %v614
    %632 = vmatpush.bf16.msra.mxu0 %v623
    %633 = vmatpush.bf16.msra.mxu0 %v622
    %634 = vmatpush.bf16.msra.mxu0 %v621
    %635 = vmatpush.bf16.msra.mxu0 %v620
    %636 = vmatpush.bf16.msra.mxu0 %v619
    %637 = vmatpush.bf16.msra.mxu0 %v618
    %638 = vmatpush.bf16.msra.mxu0 %v617
    %639 = vmatpush.bf16.msra.mxu0 %v616
    %640 = vmatmul.bf16.gmra.mxu0 %v409
    %v641 = vpop.f32.mrf.mxu0
    %v642 = vadd.f32 0.0, %v641
    %v643 = vpop.f32.mrf.mxu0
    %v644 = vadd.f32 0.0, %v643
    %645 = vdwg.mxu0
    %v646 = vpack.c.bf16 %v486, %v484
    %v647 = vpack.c.bf16 %v565, %v563
    %v648 = vpack.c.bf16 %v644, %v642
    %v649 = vld [vmem:[%s5] sm:$0x1]
    %v651 = vperm.slane %v649, 0
    %653 = vmatpush.bf16.msra.mxu0 0
    %654 = vmatpush.bf16.msra.mxu0 0
    %655 = vmatpush.bf16.msra.mxu0 0
    %656 = vmatpush.bf16.msra.mxu0 0
    %657 = vmatpush.bf16.msra.mxu0 0
    %658 = vmatpush.bf16.msra.mxu0 %v648
    %659 = vmatpush.bf16.msra.mxu0 %v647
    %660 = vmatpush.bf16.msra.mxu0 %v646
    %661 = vmatmul.bf16.gmra.mxu0 %v391
    %v662 = vpop.f32.mrf.mxu0
    %v663 = vadd.f32 %v651, %v662
    %v664 = vpop.f32.mrf.mxu0
    %v665 = vadd.f32 %v651, %v664
    %666 = vdwg.mxu0
    %v667 = vmax.f32 %v663, 0.0
    %v668 = vmax.f32 %v665, 0.0
    %v669 = vpack.c.bf16 %v668, %v667
    %v670 = vld [vmem:[#allocation10] sm:$0xf]
    %v671 = vld [vmem:[#allocation10 + $0x4] sm:$0xf]
    %v672 = vld [vmem:[#allocation10 + $0x8] sm:$0xf]
    %v673 = vld [vmem:[#allocation10 + $0xc] sm:$0xf]
    %v674 = vld [vmem:[#allocation10 + $0x10] sm:$0xf]
    %v675 = vld [vmem:[#allocation10 + $0x14] sm:$0xf]
    %v676 = vld [vmem:[#allocation10 + $0x18] sm:$0xf]
    %v677 = vld [vmem:[#allocation10 + $0x1c] sm:$0xf]
    %v678 = vld [vmem:[#allocation10 + $0x20] sm:$0xf]
    %v679 = vld [vmem:[#allocation10 + $0x24] sm:$0xf]
    %v680 = vld [vmem:[#allocation10 + $0x28] sm:$0xf]
    %v681 = vld [vmem:[#allocation10 + $0x2c] sm:$0xf]
    %v682 = vld [vmem:[#allocation10 + $0x30] sm:$0xf]
    %v683 = vld [vmem:[#allocation10 + $0x34] sm:$0xf]
    %v684 = vld [vmem:[#allocation10 + $0x38] sm:$0xf]
    %v685 = vld [vmem:[#allocation10 + $0x3c] sm:$0xf]
    %v702 = vunpack.c.l.b16 %v670
    %v703 = vunpack.c.l.b16 %v671
    %v704 = vunpack.c.l.b16 %v672
    %v705 = vunpack.c.l.b16 %v673
    %v706 = vunpack.c.l.b16 %v674
    %v707 = vunpack.c.l.b16 %v675
    %v708 = vunpack.c.l.b16 %v676
    %v709 = vunpack.c.l.b16 %v677
    %v710 = vunpack.c.l.b16 %v678
    %v711 = vunpack.c.l.b16 %v679
    %v712 = vunpack.c.l.b16 %v680
    %v713 = vunpack.c.l.b16 %v681
    %v714 = vunpack.c.l.b16 %v682
    %v715 = vunpack.c.l.b16 %v683
    %v716 = vunpack.c.l.b16 %v684
    %v717 = vunpack.c.l.b16 %v685
    %v718 = vpack.c.b16 %v703, %v702
    %v719 = vpack.c.b16 %v705, %v704
    %v720 = vpack.c.b16 %v707, %v706
    %v721 = vpack.c.b16 %v709, %v708
    %v722 = vpack.c.b16 %v711, %v710
    %v723 = vpack.c.b16 %v713, %v712
    %v724 = vpack.c.b16 %v715, %v714
    %v725 = vpack.c.b16 %v717, %v716
    %734 = vmatpush.bf16.msra.mxu0 %v725
    %735 = vmatpush.bf16.msra.mxu0 %v724
    %736 = vmatpush.bf16.msra.mxu0 %v723
    %737 = vmatpush.bf16.msra.mxu0 %v722
    %738 = vmatpush.bf16.msra.mxu0 %v721
    %739 = vmatpush.bf16.msra.mxu0 %v720
    %740 = vmatpush.bf16.msra.mxu0 %v719
    %741 = vmatpush.bf16.msra.mxu0 %v718
    %742 = vmatmul.bf16.gmra.mxu0 %v669
    %v743 = vpop.f32.mrf.mxu0
    %v744 = vadd.f32 0.0, %v743
    %v745 = vpop.f32.mrf.mxu0
    %v746 = vadd.f32 0.0, %v745
    %747 = vdwg.mxu0
    %s748 = scalar_lea.vmem [#allocation10], 64
    %v749 = vld [vmem:[%s748] sm:$0xf]
    %v750 = vld [vmem:[%s748 + $0x4] sm:$0xf]
    %v751 = vld [vmem:[%s748 + $0x8] sm:$0xf]
    %v752 = vld [vmem:[%s748 + $0xc] sm:$0xf]
    %v753 = vld [vmem:[%s748 + $0x10] sm:$0xf]
    %v754 = vld [vmem:[%s748 + $0x14] sm:$0xf]
    %v755 = vld [vmem:[%s748 + $0x18] sm:$0xf]
    %v756 = vld [vmem:[%s748 + $0x1c] sm:$0xf]
    %v757 = vld [vmem:[%s748 + $0x20] sm:$0xf]
    %v758 = vld [vmem:[%s748 + $0x24] sm:$0xf]
    %v759 = vld [vmem:[%s748 + $0x28] sm:$0xf]
    %v760 = vld [vmem:[%s748 + $0x2c] sm:$0xf]
    %v761 = vld [vmem:[%s748 + $0x30] sm:$0xf]
    %v762 = vld [vmem:[%s748 + $0x34] sm:$0xf]
    %v763 = vld [vmem:[%s748 + $0x38] sm:$0xf]
    %v764 = vld [vmem:[%s748 + $0x3c] sm:$0xf]
    %v781 = vunpack.c.l.b16 %v749
    %v782 = vunpack.c.l.b16 %v750
    %v783 = vunpack.c.l.b16 %v751
    %v784 = vunpack.c.l.b16 %v752
    %v785 = vunpack.c.l.b16 %v753
    %v786 = vunpack.c.l.b16 %v754
    %v787 = vunpack.c.l.b16 %v755
    %v788 = vunpack.c.l.b16 %v756
    %v789 = vunpack.c.l.b16 %v757
    %v790 = vunpack.c.l.b16 %v758
    %v791 = vunpack.c.l.b16 %v759
    %v792 = vunpack.c.l.b16 %v760
    %v793 = vunpack.c.l.b16 %v761
    %v794 = vunpack.c.l.b16 %v762
    %v795 = vunpack.c.l.b16 %v763
    %v796 = vunpack.c.l.b16 %v764
    %v797 = vpack.c.b16 %v782, %v781
    %v798 = vpack.c.b16 %v784, %v783
    %v799 = vpack.c.b16 %v786, %v785
    %v800 = vpack.c.b16 %v788, %v787
    %v801 = vpack.c.b16 %v790, %v789
    %v802 = vpack.c.b16 %v792, %v791
    %v803 = vpack.c.b16 %v794, %v793
    %v804 = vpack.c.b16 %v796, %v795
    %813 = vmatpush.bf16.msra.mxu0 %v804
    %814 = vmatpush.bf16.msra.mxu0 %v803
    %815 = vmatpush.bf16.msra.mxu0 %v802
    %816 = vmatpush.bf16.msra.mxu0 %v801
    %817 = vmatpush.bf16.msra.mxu0 %v800
    %818 = vmatpush.bf16.msra.mxu0 %v799
    %819 = vmatpush.bf16.msra.mxu0 %v798
    %820 = vmatpush.bf16.msra.mxu0 %v797
    %821 = vmatmul.bf16.gmra.mxu0 %v669
    %v822 = vpop.f32.mrf.mxu0
    %v823 = vadd.f32 0.0, %v822
    %v824 = vpop.f32.mrf.mxu0
    %v825 = vadd.f32 0.0, %v824
    %826 = vdwg.mxu0
    %s827 = scalar_lea.vmem [#allocation10], 128
    %v828 = vld [vmem:[%s827] sm:$0xf]
    %v829 = vld [vmem:[%s827 + $0x4] sm:$0xf]
    %v830 = vld [vmem:[%s827 + $0x8] sm:$0xf]
    %v831 = vld [vmem:[%s827 + $0xc] sm:$0xf]
    %v832 = vld [vmem:[%s827 + $0x10] sm:$0xf]
    %v833 = vld [vmem:[%s827 + $0x14] sm:$0xf]
    %v834 = vld [vmem:[%s827 + $0x18] sm:$0xf]
    %v835 = vld [vmem:[%s827 + $0x1c] sm:$0xf]
    %v836 = vld [vmem:[%s827 + $0x20] sm:$0xf]
    %v837 = vld [vmem:[%s827 + $0x24] sm:$0xf]
    %v838 = vld [vmem:[%s827 + $0x28] sm:$0xf]
    %v839 = vld [vmem:[%s827 + $0x2c] sm:$0xf]
    %v840 = vld [vmem:[%s827 + $0x30] sm:$0xf]
    %v841 = vld [vmem:[%s827 + $0x34] sm:$0xf]
    %v842 = vld [vmem:[%s827 + $0x38] sm:$0xf]
    %v843 = vld [vmem:[%s827 + $0x3c] sm:$0xf]
    %v860 = vunpack.c.l.b16 %v828
    %v861 = vunpack.c.l.b16 %v829
    %v862 = vunpack.c.l.b16 %v830
    %v863 = vunpack.c.l.b16 %v831
    %v864 = vunpack.c.l.b16 %v832
    %v865 = vunpack.c.l.b16 %v833
    %v866 = vunpack.c.l.b16 %v834
    %v867 = vunpack.c.l.b16 %v835
    %v868 = vunpack.c.l.b16 %v836
    %v869 = vunpack.c.l.b16 %v837
    %v870 = vunpack.c.l.b16 %v838
    %v871 = vunpack.c.l.b16 %v839
    %v872 = vunpack.c.l.b16 %v840
    %v873 = vunpack.c.l.b16 %v841
    %v874 = vunpack.c.l.b16 %v842
    %v875 = vunpack.c.l.b16 %v843
    %v876 = vpack.c.b16 %v861, %v860
    %v877 = vpack.c.b16 %v863, %v862
    %v878 = vpack.c.b16 %v865, %v864
    %v879 = vpack.c.b16 %v867, %v866
    %v880 = vpack.c.b16 %v869, %v868
    %v881 = vpack.c.b16 %v871, %v870
    %v882 = vpack.c.b16 %v873, %v872
    %v883 = vpack.c.b16 %v875, %v874
    %892 = vmatpush.bf16.msra.mxu0 %v883
    %893 = vmatpush.bf16.msra.mxu0 %v882
    %894 = vmatpush.bf16.msra.mxu0 %v881
    %895 = vmatpush.bf16.msra.mxu0 %v880
    %896 = vmatpush.bf16.msra.mxu0 %v879
    %897 = vmatpush.bf16.msra.mxu0 %v878
    %898 = vmatpush.bf16.msra.mxu0 %v877
    %899 = vmatpush.bf16.msra.mxu0 %v876
    %900 = vmatmul.bf16.gmra.mxu0 %v669
    %v901 = vpop.f32.mrf.mxu0
    %v902 = vadd.f32 0.0, %v901
    %v903 = vpop.f32.mrf.mxu0
    %v904 = vadd.f32 0.0, %v903
    %905 = vdwg.mxu0
    %v906 = vpack.c.bf16 %v746, %v744
    %v907 = vpack.c.bf16 %v825, %v823
    %v908 = vpack.c.bf16 %v904, %v902
    %v909 = vld [vmem:[%s7] sm:$0x1]
    %v911 = vperm.slane %v909, 0
    %913 = vmatpush.bf16.msra.mxu0 0
    %914 = vmatpush.bf16.msra.mxu0 0
    %915 = vmatpush.bf16.msra.mxu0 0
    %916 = vmatpush.bf16.msra.mxu0 0
    %917 = vmatpush.bf16.msra.mxu0 0
    %918 = vmatpush.bf16.msra.mxu0 %v908
    %919 = vmatpush.bf16.msra.mxu0 %v907
    %920 = vmatpush.bf16.msra.mxu0 %v906
    %921 = vmatmul.bf16.gmra.mxu0 %v391
    %v922 = vpop.f32.mrf.mxu0
    %v923 = vadd.f32 %v911, %v922
    %v924 = vpop.f32.mrf.mxu0
    %v925 = vadd.f32 %v911, %v924
    %926 = vdwg.mxu0
    %v927 = vmax.f32 %v923, 0.0
    %v928 = vmax.f32 %v925, 0.0
    %v929 = vpack.c.bf16 %v928, %v927
    %v930 = vld [vmem:[#allocation11] sm:$0xf]
    %v931 = vld [vmem:[#allocation11 + $0x4] sm:$0xf]
    %v932 = vld [vmem:[#allocation11 + $0x8] sm:$0xf]
    %v933 = vld [vmem:[#allocation11 + $0xc] sm:$0xf]
    %v934 = vld [vmem:[#allocation11 + $0x10] sm:$0xf]
    %v935 = vld [vmem:[#allocation11 + $0x14] sm:$0xf]
    %v936 = vld [vmem:[#allocation11 + $0x18] sm:$0xf]
    %v937 = vld [vmem:[#allocation11 + $0x1c] sm:$0xf]
    %v938 = vld [vmem:[#allocation11 + $0x20] sm:$0xf]
    %v939 = vld [vmem:[#allocation11 + $0x24] sm:$0xf]
    %v940 = vld [vmem:[#allocation11 + $0x28] sm:$0xf]
    %v941 = vld [vmem:[#allocation11 + $0x2c] sm:$0xf]
    %v942 = vld [vmem:[#allocation11 + $0x30] sm:$0xf]
    %v943 = vld [vmem:[#allocation11 + $0x34] sm:$0xf]
    %v944 = vld [vmem:[#allocation11 + $0x38] sm:$0xf]
    %v945 = vld [vmem:[#allocation11 + $0x3c] sm:$0xf]
    %v962 = vunpack.c.l.b16 %v930
    %v963 = vunpack.c.l.b16 %v931
    %v964 = vunpack.c.l.b16 %v932
    %v965 = vunpack.c.l.b16 %v933
    %v966 = vunpack.c.l.b16 %v934
    %v967 = vunpack.c.l.b16 %v935
    %v968 = vunpack.c.l.b16 %v936
    %v969 = vunpack.c.l.b16 %v937
    %v970 = vunpack.c.l.b16 %v938
    %v971 = vunpack.c.l.b16 %v939
    %v972 = vunpack.c.l.b16 %v940
    %v973 = vunpack.c.l.b16 %v941
    %v974 = vunpack.c.l.b16 %v942
    %v975 = vunpack.c.l.b16 %v943
    %v976 = vunpack.c.l.b16 %v944
    %v977 = vunpack.c.l.b16 %v945
    %v978 = vpack.c.b16 %v963, %v962
    %v979 = vpack.c.b16 %v965, %v964
    %v980 = vpack.c.b16 %v967, %v966
    %v981 = vpack.c.b16 %v969, %v968
    %v982 = vpack.c.b16 %v971, %v970
    %v983 = vpack.c.b16 %v973, %v972
    %v984 = vpack.c.b16 %v975, %v974
    %v985 = vpack.c.b16 %v977, %v976
    %994 = vmatpush.bf16.msra.mxu0 %v985
    %995 = vmatpush.bf16.msra.mxu0 %v984
    %996 = vmatpush.bf16.msra.mxu0 %v983
    %997 = vmatpush.bf16.msra.mxu0 %v982
    %998 = vmatpush.bf16.msra.mxu0 %v981
    %999 = vmatpush.bf16.msra.mxu0 %v980
    %1000 = vmatpush.bf16.msra.mxu0 %v979
    %1001 = vmatpush.bf16.msra.mxu0 %v978
    %1002 = vmatmul.bf16.gmra.mxu0 %v929
    %v1003 = vpop.f32.mrf.mxu0
    %v1004 = vadd.f32 0.0, %v1003
    %v1005 = vpop.f32.mrf.mxu0
    %v1006 = vadd.f32 0.0, %v1005
    %1007 = vdwg.mxu0
    %s1008 = scalar_lea.vmem [#allocation11], 64
    %v1009 = vld [vmem:[%s1008] sm:$0xf]
    %v1010 = vld [vmem:[%s1008 + $0x4] sm:$0xf]
    %v1011 = vld [vmem:[%s1008 + $0x8] sm:$0xf]
    %v1012 = vld [vmem:[%s1008 + $0xc] sm:$0xf]
    %v1013 = vld [vmem:[%s1008 + $0x10] sm:$0xf]
    %v1014 = vld [vmem:[%s1008 + $0x14] sm:$0xf]
    %v1015 = vld [vmem:[%s1008 + $0x18] sm:$0xf]
    %v1016 = vld [vmem:[%s1008 + $0x1c] sm:$0xf]
    %v1017 = vld [vmem:[%s1008 + $0x20] sm:$0xf]
    %v1018 = vld [vmem:[%s1008 + $0x24] sm:$0xf]
    %v1019 = vld [vmem:[%s1008 + $0x28] sm:$0xf]
    %v1020 = vld [vmem:[%s1008 + $0x2c] sm:$0xf]
    %v1021 = vld [vmem:[%s1008 + $0x30] sm:$0xf]
    %v1022 = vld [vmem:[%s1008 + $0x34] sm:$0xf]
    %v1023 = vld [vmem:[%s1008 + $0x38] sm:$0xf]
    %v1024 = vld [vmem:[%s1008 + $0x3c] sm:$0xf]
    %v1041 = vunpack.c.l.b16 %v1009
    %v1042 = vunpack.c.l.b16 %v1010
    %v1043 = vunpack.c.l.b16 %v1011
    %v1044 = vunpack.c.l.b16 %v1012
    %v1045 = vunpack.c.l.b16 %v1013
    %v1046 = vunpack.c.l.b16 %v1014
    %v1047 = vunpack.c.l.b16 %v1015
    %v1048 = vunpack.c.l.b16 %v1016
    %v1049 = vunpack.c.l.b16 %v1017
    %v1050 = vunpack.c.l.b16 %v1018
    %v1051 = vunpack.c.l.b16 %v1019
    %v1052 = vunpack.c.l.b16 %v1020
    %v1053 = vunpack.c.l.b16 %v1021
    %v1054 = vunpack.c.l.b16 %v1022
    %v1055 = vunpack.c.l.b16 %v1023
    %v1056 = vunpack.c.l.b16 %v1024
    %v1057 = vpack.c.b16 %v1042, %v1041
    %v1058 = vpack.c.b16 %v1044, %v1043
    %v1059 = vpack.c.b16 %v1046, %v1045
    %v1060 = vpack.c.b16 %v1048, %v1047
    %v1061 = vpack.c.b16 %v1050, %v1049
    %v1062 = vpack.c.b16 %v1052, %v1051
    %v1063 = vpack.c.b16 %v1054, %v1053
    %v1064 = vpack.c.b16 %v1056, %v1055
    %1073 = vmatpush.bf16.msra.mxu0 %v1064
    %1074 = vmatpush.bf16.msra.mxu0 %v1063
    %1075 = vmatpush.bf16.msra.mxu0 %v1062
    %1076 = vmatpush.bf16.msra.mxu0 %v1061
    %1077 = vmatpush.bf16.msra.mxu0 %v1060
    %1078 = vmatpush.bf16.msra.mxu0 %v1059
    %1079 = vmatpush.bf16.msra.mxu0 %v1058
    %1080 = vmatpush.bf16.msra.mxu0 %v1057
    %1081 = vmatmul.bf16.gmra.mxu0 %v929
    %v1082 = vpop.f32.mrf.mxu0
    %v1083 = vadd.f32 0.0, %v1082
    %v1084 = vpop.f32.mrf.mxu0
    %v1085 = vadd.f32 0.0, %v1084
    %1086 = vdwg.mxu0
    %s1087 = scalar_lea.vmem [#allocation11], 128
    %v1088 = vld [vmem:[%s1087] sm:$0xf]
    %v1089 = vld [vmem:[%s1087 + $0x4] sm:$0xf]
    %v1090 = vld [vmem:[%s1087 + $0x8] sm:$0xf]
    %v1091 = vld [vmem:[%s1087 + $0xc] sm:$0xf]
    %v1092 = vld [vmem:[%s1087 + $0x10] sm:$0xf]
    %v1093 = vld [vmem:[%s1087 + $0x14] sm:$0xf]
    %v1094 = vld [vmem:[%s1087 + $0x18] sm:$0xf]
    %v1095 = vld [vmem:[%s1087 + $0x1c] sm:$0xf]
    %v1096 = vld [vmem:[%s1087 + $0x20] sm:$0xf]
    %v1097 = vld [vmem:[%s1087 + $0x24] sm:$0xf]
    %v1098 = vld [vmem:[%s1087 + $0x28] sm:$0xf]
    %v1099 = vld [vmem:[%s1087 + $0x2c] sm:$0xf]
    %v1100 = vld [vmem:[%s1087 + $0x30] sm:$0xf]
    %v1101 = vld [vmem:[%s1087 + $0x34] sm:$0xf]
    %v1102 = vld [vmem:[%s1087 + $0x38] sm:$0xf]
    %v1103 = vld [vmem:[%s1087 + $0x3c] sm:$0xf]
    %v1120 = vunpack.c.l.b16 %v1088
    %v1121 = vunpack.c.l.b16 %v1089
    %v1122 = vunpack.c.l.b16 %v1090
    %v1123 = vunpack.c.l.b16 %v1091
    %v1124 = vunpack.c.l.b16 %v1092
    %v1125 = vunpack.c.l.b16 %v1093
    %v1126 = vunpack.c.l.b16 %v1094
    %v1127 = vunpack.c.l.b16 %v1095
    %v1128 = vunpack.c.l.b16 %v1096
    %v1129 = vunpack.c.l.b16 %v1097
    %v1130 = vunpack.c.l.b16 %v1098
    %v1131 = vunpack.c.l.b16 %v1099
    %v1132 = vunpack.c.l.b16 %v1100
    %v1133 = vunpack.c.l.b16 %v1101
    %v1134 = vunpack.c.l.b16 %v1102
    %v1135 = vunpack.c.l.b16 %v1103
    %v1136 = vpack.c.b16 %v1121, %v1120
    %v1137 = vpack.c.b16 %v1123, %v1122
    %v1138 = vpack.c.b16 %v1125, %v1124
    %v1139 = vpack.c.b16 %v1127, %v1126
    %v1140 = vpack.c.b16 %v1129, %v1128
    %v1141 = vpack.c.b16 %v1131, %v1130
    %v1142 = vpack.c.b16 %v1133, %v1132
    %v1143 = vpack.c.b16 %v1135, %v1134
    %1152 = vmatpush.bf16.msra.mxu0 %v1143
    %1153 = vmatpush.bf16.msra.mxu0 %v1142
    %1154 = vmatpush.bf16.msra.mxu0 %v1141
    %1155 = vmatpush.bf16.msra.mxu0 %v1140
    %1156 = vmatpush.bf16.msra.mxu0 %v1139
    %1157 = vmatpush.bf16.msra.mxu0 %v1138
    %1158 = vmatpush.bf16.msra.mxu0 %v1137
    %1159 = vmatpush.bf16.msra.mxu0 %v1136
    %1160 = vmatmul.bf16.gmra.mxu0 %v929
    %v1161 = vpop.f32.mrf.mxu0
    %v1162 = vadd.f32 0.0, %v1161
    %v1163 = vpop.f32.mrf.mxu0
    %v1164 = vadd.f32 0.0, %v1163
    %1165 = vdwg.mxu0
    %v1166 = vpack.c.bf16 %v1006, %v1004
    %v1167 = vpack.c.bf16 %v1085, %v1083
    %v1168 = vpack.c.bf16 %v1164, %v1162
    %v1169 = vld [vmem:[%s9] sm:$0x1]
    %v1171 = vperm.slane %v1169, 0
    %1173 = vmatpush.bf16.msra.mxu0 0
    %1174 = vmatpush.bf16.msra.mxu0 0
    %1175 = vmatpush.bf16.msra.mxu0 0
    %1176 = vmatpush.bf16.msra.mxu0 0
    %1177 = vmatpush.bf16.msra.mxu0 0
    %1178 = vmatpush.bf16.msra.mxu0 %v1168
    %1179 = vmatpush.bf16.msra.mxu0 %v1167
    %1180 = vmatpush.bf16.msra.mxu0 %v1166
    %1181 = vmatmul.bf16.gmra.mxu0 %v391
    %v1182 = vpop.f32.mrf.mxu0
    %v1183 = vadd.f32 %v1171, %v1182
    %v1184 = vpop.f32.mrf.mxu0
    %v1185 = vadd.f32 %v1171, %v1184
    %1186 = vdwg.mxu0
    %1187 = vst [vmem:[#allocation13] sm:$0xff] %v1183
    %1188 = vst [vmem:[#allocation13 + $0x8] sm:$0xff] %v1185
    // Predicated region
    $region66: #{tpu_custom_call.1} parent=1 // pred_check
      _
    $region67: #{tpu_custom_call.1} parent=1 // pred_check_branch
      %1190 = sbr.rel (0) target = $region69
    $region68: #{tpu_custom_call.1} parent=1 // pred_region
      %1192 = vsyncadd [#allocation4], 0
      %s1193 = sshll.u32 [#allocation13], 4
      %s1194 = int_to_ptr.vmem [resolvable:$true] %s1193
      %s1195 = sshll.u32 %s10, 4
      %s1196 = int_to_ptr.hbm [resolvable:$true] %s1195
      %1201 = dma.vmem_to_hbm [thread:$0]  %s1194, 256, %s1196, [#allocation4], 128, 128, 8
    $region69: #{tpu_custom_call.1} parent=1 // pred_fallthru
      _
    // Predicated region
    $region70: #{tpu_custom_call.1} parent=1 // pred_check
      _
    $region71: #{tpu_custom_call.1} parent=1 // pred_check_branch
      %1203 = sbr.rel (0) target = $region73
    $region72: #{tpu_custom_call.1} parent=1 // pred_region
      %1205 = dma.done [#allocation4], 256
    $region73: #{tpu_custom_call.1} parent=1 // pred_fallthru
      _
    %1206 = vsyncpa [#allocation3], 1
    %1207 = vsyncpa [#allocation6], 1
    %1208 = vsyncpa [#allocation9], 1
    %1209 = vsyncpa [#allocation12], 1
    %1210 = vsyncpa [#allocation4], 1

</llo_original>
